<compile_context>
chip_gen: v5e
topology: v5e:2x2
jax: 0.10.0
libtpu: 0.0.40
codegen_flags: <defaults>
</compile_context>

<pallas_src>
import functools

import jax
import jax.numpy as jnp
from jax.experimental import pallas as pl
from jax.experimental.pallas import tpu as pltpu


def _round_up(x, m):
    return (x + m - 1) // m * m


def _policy_kernel(x_ref, w1_ref, b1_ref, w2_ref, b2_ref,
                   w3_ref, b3_ref, w4_ref, b4_ref, o_ref):
    """One (TB, in_dim) batch tile through the whole MLP + softmax."""

    def leaky_relu(h):
        # single vmul + vmax (slope 0.1 < 1, so max picks the right branch)
        return jnp.maximum(h, 0.1 * h)

    def dense(h_bf16, w_ref, b_ref):
        # bf16 operands on the MXU, f32 accumulation, f32 bias add.
        return jnp.dot(h_bf16, w_ref[...],
                       preferred_element_type=jnp.float32) + b_ref[...]

    x = x_ref[...]                                     # (TB, in_dim) bf16
    h = leaky_relu(dense(x, w1_ref, b1_ref))           # f32
    h = leaky_relu(dense(h.astype(jnp.bfloat16), w2_ref, b2_ref))
    h = leaky_relu(dense(h.astype(jnp.bfloat16), w3_ref, b3_ref))
    logits = dense(h.astype(jnp.bfloat16), w4_ref, b4_ref)   # (TB, 128) f32

    n = o_ref.shape[-1]                                # static (e.g. 4)
    lg = logits[:, :n]                                 # real classifier columns
    m = jnp.max(lg, axis=-1, keepdims=True)
    e = jnp.exp(lg - m)
    denom = jnp.sum(e, axis=-1, keepdims=True)
    o_ref[...] = (e / denom).astype(o_ref.dtype)       # exact normalize


@functools.partial(jax.jit, static_argnames=("n", "tb"))
def policy_forward(x, params, *, n=4, tb=2048):
    """x: (B, in_dim) f32 or bf16 -> probs: (B, n) f32.

    Pass x as bf16 when possible to avoid an extra cast pass over HBM.
    """
    w1, b1, w2, b2, w3, b3, w4, b4 = params
    B, in_dim = x.shape
    hidden = w1.shape[1]
    out_pad = w4.shape[1]                              # lane-dense padded width (128)

    if x.dtype != jnp.bfloat16:
        # MXU rounds operands to bf16 anyway; this just halves kernel read bytes.
        x = x.astype(jnp.bfloat16)

    # Batch tile: multiple of 8 sublanes, capped at `tb` (2048 default keeps the
    # double-buffered footprint well under every gen's scoped-VMEM default).
    TB = min(tb, _round_up(B, 8))
    grid = (pl.cdiv(B, TB),)                           # partial edge block masked

    resident = lambda shape: pl.BlockSpec(shape, lambda i: (0, 0))

    probs = pl.pallas_call(
        _policy_kernel,
        out_shape=jax.ShapeDtypeStruct((B, n), jnp.float32),
        grid=grid,
        in_specs=[
            pl.BlockSpec((TB, in_dim), lambda i: (i, 0)),   # x: tiled over batch
            resident((in_dim, hidden)), resident((1, hidden)),
            resident((hidden, hidden)), resident((1, hidden)),
            resident((hidden, hidden)), resident((1, hidden)),
            resident((hidden, out_pad)), resident((1, out_pad)),
        ],
        out_specs=pl.BlockSpec((TB, n), lambda i: (i, 0)),  # narrow (16 B/row) writeback
        compiler_params=pltpu.CompilerParams(
            dimension_semantics=("parallel",)),
    )(x, w1, b1, w2, b2, w3, b3, w4, b4)

    return probs


def init_params(key, in_dim=128, hidden=128, n=4, out_pad=128):
    """Torch-Linear-style init (U(-1/sqrt(fan_in), +)).

    Returns:
      kernel_params: weights pre-transposed to (in, out), bf16, classifier
        padded to `out_pad` columns (zero weights / zero bias in the pad — the
        kernel slices the first n columns before the softmax); biases f32.
      ref_params:    unpadded f32 params for the pure-JAX reference.
    """
    dims = [(in_dim, hidden), (hidden, hidden), (hidden, hidden), (hidden, n)]
    ref_params, kernel_params = [], []
    for li, (fan_in, fan_out) in enumerate(dims):
        key, kw, kb = jax.random.split(key, 3)
        bound = 1.0 / jnp.sqrt(fan_in)
        w = jax.random.uniform(kw, (fan_in, fan_out), jnp.float32, -bound, bound)
        b = jax.random.uniform(kb, (1, fan_out), jnp.float32, -bound, bound)
        ref_params.extend([w, b])
        if li == len(dims) - 1 and fan_out < out_pad:
            pad = out_pad - fan_out
            wk = jnp.pad(w, ((0, 0), (0, pad)))        # zero weights in pad columns
            bk = jnp.pad(b, ((0, 0), (0, pad)))        # pad bias irrelevant (sliced out)
        else:
            wk, bk = w, b
        kernel_params.extend([wk.astype(jnp.bfloat16), bk.astype(jnp.float32)])
    return tuple(kernel_params), tuple(ref_params)


def policy_forward_ref_f32(x, ref_params):
    """Pure f32 JAX reference (PyTorch-exact math)."""
    w1, b1, w2, b2, w3, b3, w4, b4 = ref_params
    lrelu = lambda h: jnp.where(h > 0, h, 0.1 * h)
    h = lrelu(x @ w1 + b1)
    h = lrelu(h @ w2 + b2)
    h = lrelu(h @ w3 + b3)
    return jax.nn.softmax(h @ w4 + b4, axis=-1)


def policy_forward_ref_bf16(x, ref_params):
    """Reference matching the kernel's bf16-operand / f32-accum matmul path."""
    w1, b1, w2, b2, w3, b3, w4, b4 = ref_params
    lrelu = lambda h: jnp.maximum(h, 0.1 * h)
    dense = lambda h, w, b: jnp.dot(h.astype(jnp.bfloat16), w.astype(jnp.bfloat16),
                                    preferred_element_type=jnp.float32) + b
    h = lrelu(dense(x, w1, b1))
    h = lrelu(dense(h, w2, b2))
    h = lrelu(dense(h, w3, b3))
    return jax.nn.softmax(dense(h, w4, b4), axis=-1)


if __name__ == "__main__":
    key = jax.random.PRNGKey(0)
    k_params, k_x = jax.random.split(key)

    in_dim, hidden, n, batch = 128, 128, 4, 8
    kernel_params, ref_params = init_params(k_params, in_dim=in_dim,
                                            hidden=hidden, n=n)
    x = jax.random.normal(k_x, (batch, in_dim), jnp.float32)
    x_bf16 = x.astype(jnp.bfloat16)        # "stored bf16 upstream" fast path

    out = policy_forward(x_bf16, kernel_params, n=n)
    out = jax.block_until_ready(out)
    assert out.shape == (batch, n)

    # exact division in the kernel => rows sum to 1 tightly
    assert jnp.allclose(jnp.sum(out, axis=-1), 1.0, atol=1e-5)

    # tight check against the same bf16-operand compute path
    ref_bf16 = policy_forward_ref_bf16(x, ref_params)
    assert jnp.allclose(out, ref_bf16, atol=5e-3, rtol=5e-3)

    # loose check against the exact f32 PyTorch-equivalent math
    ref_f32 = policy_forward_ref_f32(x, ref_params)
    assert jnp.allclose(out, ref_f32, atol=5e-2)

    print("KERNEL_OK")
</pallas_src>

<mosaic_0001>
module attributes {stable_mosaic.version = 11 : i64} {
  func.func @_policy_kernel(%arg0: i32, %arg1: memref<8x128xbf16, #tpu.memory_space<vmem>>, %arg2: memref<128x128xbf16, #tpu.memory_space<vmem>>, %arg3: memref<1x128xf32, #tpu.memory_space<vmem>>, %arg4: memref<128x128xbf16, #tpu.memory_space<vmem>>, %arg5: memref<1x128xf32, #tpu.memory_space<vmem>>, %arg6: memref<128x128xbf16, #tpu.memory_space<vmem>>, %arg7: memref<1x128xf32, #tpu.memory_space<vmem>>, %arg8: memref<128x128xbf16, #tpu.memory_space<vmem>>, %arg9: memref<1x128xf32, #tpu.memory_space<vmem>>, %arg10: memref<8x4xf32, #tpu.memory_space<vmem>>) attributes {dimension_semantics = [#tpu.dimension_semantics<parallel>], iteration_bounds = array<i64: 1>, scalar_prefetch = 0 : i64, scratch_operands = 0 : i64, tpu.core_type = #tpu.core_type<tc>, window_params = [{transform_indices = @transform_0, window_bounds = array<i64: 8, 128>}, {pipeline_mode = #tpu.pipeline_mode<synchronous>, transform_indices = @transform_1, window_bounds = array<i64: 128, 128>}, {pipeline_mode = #tpu.pipeline_mode<synchronous>, transform_indices = @transform_2, window_bounds = array<i64: 1, 128>}, {pipeline_mode = #tpu.pipeline_mode<synchronous>, transform_indices = @transform_3, window_bounds = array<i64: 128, 128>}, {pipeline_mode = #tpu.pipeline_mode<synchronous>, transform_indices = @transform_4, window_bounds = array<i64: 1, 128>}, {pipeline_mode = #tpu.pipeline_mode<synchronous>, transform_indices = @transform_5, window_bounds = array<i64: 128, 128>}, {pipeline_mode = #tpu.pipeline_mode<synchronous>, transform_indices = @transform_6, window_bounds = array<i64: 1, 128>}, {pipeline_mode = #tpu.pipeline_mode<synchronous>, transform_indices = @transform_7, window_bounds = array<i64: 128, 128>}, {pipeline_mode = #tpu.pipeline_mode<synchronous>, transform_indices = @transform_8, window_bounds = array<i64: 1, 128>}, {transform_indices = @transform_9, window_bounds = array<i64: 8, 4>}]} {
    %c0 = arith.constant 0 : index
    %c0_0 = arith.constant 0 : index
    %0 = vector.load %arg1[%c0, %c0_0] : memref<8x128xbf16, #tpu.memory_space<vmem>>, vector<8x128xbf16>
    %c0_1 = arith.constant 0 : index
    %c0_2 = arith.constant 0 : index
    %1 = vector.load %arg2[%c0_1, %c0_2] : memref<128x128xbf16, #tpu.memory_space<vmem>>, vector<128x128xbf16>
    %cst = arith.constant dense<0.000000e+00> : vector<8x128xf32>
    %2 = tpu.matmul %0, %1, %cst {dimension_numbers = #tpu.dot_dimension_numbers<[1], [0], [0], [1], [0, 0, 1, 1], [], []>} : vector<8x128xbf16>, vector<128x128xbf16>, vector<8x128xf32> -> vector<8x128xf32>
    %c0_3 = arith.constant 0 : index
    %c0_4 = arith.constant 0 : index
    %3 = vector.load %arg3[%c0_3, %c0_4] : memref<1x128xf32, #tpu.memory_space<vmem>>, vector<1x128xf32>
    %4 = vector.broadcast %3 : vector<1x128xf32> to vector<8x128xf32>
    %5 = arith.addf %2, %4 : vector<8x128xf32>
    %cst_5 = arith.constant 1.000000e-01 : f32
    %6 = vector.broadcast %cst_5 : f32 to vector<8x128xf32>
    %7 = arith.mulf %6, %5 : vector<8x128xf32>
    %8 = arith.maximumf %5, %7 : vector<8x128xf32>
    %9 = arith.truncf %8 : vector<8x128xf32> to vector<8x128xbf16>
    %c0_6 = arith.constant 0 : index
    %c0_7 = arith.constant 0 : index
    %10 = vector.load %arg4[%c0_6, %c0_7] : memref<128x128xbf16, #tpu.memory_space<vmem>>, vector<128x128xbf16>
    %cst_8 = arith.constant dense<0.000000e+00> : vector<8x128xf32>
    %11 = tpu.matmul %9, %10, %cst_8 {dimension_numbers = #tpu.dot_dimension_numbers<[1], [0], [0], [1], [0, 0, 1, 1], [], []>} : vector<8x128xbf16>, vector<128x128xbf16>, vector<8x128xf32> -> vector<8x128xf32>
    %c0_9 = arith.constant 0 : index
    %c0_10 = arith.constant 0 : index
    %12 = vector.load %arg5[%c0_9, %c0_10] : memref<1x128xf32, #tpu.memory_space<vmem>>, vector<1x128xf32>
    %13 = vector.broadcast %12 : vector<1x128xf32> to vector<8x128xf32>
    %14 = arith.addf %11, %13 : vector<8x128xf32>
    %cst_11 = arith.constant 1.000000e-01 : f32
    %15 = vector.broadcast %cst_11 : f32 to vector<8x128xf32>
    %16 = arith.mulf %15, %14 : vector<8x128xf32>
    %17 = arith.maximumf %14, %16 : vector<8x128xf32>
    %18 = arith.truncf %17 : vector<8x128xf32> to vector<8x128xbf16>
    %c0_12 = arith.constant 0 : index
    %c0_13 = arith.constant 0 : index
    %19 = vector.load %arg6[%c0_12, %c0_13] : memref<128x128xbf16, #tpu.memory_space<vmem>>, vector<128x128xbf16>
    %cst_14 = arith.constant dense<0.000000e+00> : vector<8x128xf32>
    %20 = tpu.matmul %18, %19, %cst_14 {dimension_numbers = #tpu.dot_dimension_numbers<[1], [0], [0], [1], [0, 0, 1, 1], [], []>} : vector<8x128xbf16>, vector<128x128xbf16>, vector<8x128xf32> -> vector<8x128xf32>
    %c0_15 = arith.constant 0 : index
    %c0_16 = arith.constant 0 : index
    %21 = vector.load %arg7[%c0_15, %c0_16] : memref<1x128xf32, #tpu.memory_space<vmem>>, vector<1x128xf32>
    %22 = vector.broadcast %21 : vector<1x128xf32> to vector<8x128xf32>
    %23 = arith.addf %20, %22 : vector<8x128xf32>
    %cst_17 = arith.constant 1.000000e-01 : f32
    %24 = vector.broadcast %cst_17 : f32 to vector<8x128xf32>
    %25 = arith.mulf %24, %23 : vector<8x128xf32>
    %26 = arith.maximumf %23, %25 : vector<8x128xf32>
    %27 = arith.truncf %26 : vector<8x128xf32> to vector<8x128xbf16>
    %c0_18 = arith.constant 0 : index
    %c0_19 = arith.constant 0 : index
    %28 = vector.load %arg8[%c0_18, %c0_19] : memref<128x128xbf16, #tpu.memory_space<vmem>>, vector<128x128xbf16>
    %cst_20 = arith.constant dense<0.000000e+00> : vector<8x128xf32>
    %29 = tpu.matmul %27, %28, %cst_20 {dimension_numbers = #tpu.dot_dimension_numbers<[1], [0], [0], [1], [0, 0, 1, 1], [], []>} : vector<8x128xbf16>, vector<128x128xbf16>, vector<8x128xf32> -> vector<8x128xf32>
    %c0_21 = arith.constant 0 : index
    %c0_22 = arith.constant 0 : index
    %30 = vector.load %arg9[%c0_21, %c0_22] : memref<1x128xf32, #tpu.memory_space<vmem>>, vector<1x128xf32>
    %31 = vector.broadcast %30 : vector<1x128xf32> to vector<8x128xf32>
    %32 = arith.addf %29, %31 : vector<8x128xf32>
    %33 = vector.extract_strided_slice %32 {offsets = [0, 0], sizes = [8, 4], strides = [1, 1]} : vector<8x128xf32> to vector<8x4xf32>
    %cst_23 = arith.constant dense<0xFF800000> : vector<8xf32>
    %34 = vector.multi_reduction <maximumf>, %33, %cst_23 [1] : vector<8x4xf32> to vector<8xf32>
    %35 = vector.shape_cast %34 : vector<8xf32> to vector<8x1xf32>
    %36 = vector.broadcast %35 : vector<8x1xf32> to vector<8x4xf32>
    %37 = arith.subf %33, %36 : vector<8x4xf32>
    %38 = math.exp %37 : vector<8x4xf32>
    %cst_24 = arith.constant dense<0.000000e+00> : vector<8xf32>
    %39 = vector.multi_reduction <add>, %38, %cst_24 [1] : vector<8x4xf32> to vector<8xf32>
    %40 = vector.shape_cast %39 : vector<8xf32> to vector<8x1xf32>
    %41 = vector.broadcast %40 : vector<8x1xf32> to vector<8x4xf32>
    %42 = arith.divf %38, %41 : vector<8x4xf32>
    %c0_25 = arith.constant 0 : index
    %c0_26 = arith.constant 0 : index
    %43 = vector.load %arg10[%c0_25, %c0_26] : memref<8x4xf32, #tpu.memory_space<vmem>>, vector<8x4xf32>
    tpu.vector_store %arg10[%c0_25, %c0_26], %42 {strides = array<i32>} : memref<8x4xf32, #tpu.memory_space<vmem>>, vector<8x4xf32>,
    return
  }
  func.func @transform_0(%arg0: i32) -> (i32, i32) {
    %c0_i32 = arith.constant 0 : i32
    %c0_i32_0 = arith.constant 0 : i32
    return %arg0, %c0_i32 : i32, i32
  }
  func.func @transform_1(%arg0: i32) -> (i32, i32) {
    %c0_i32 = arith.constant 0 : i32
    %c0_i32_0 = arith.constant 0 : i32
    %c0_i32_1 = arith.constant 0 : i32
    return %c0_i32, %c0_i32_0 : i32, i32
  }
  func.func @transform_2(%arg0: i32) -> (i32, i32) {
    %c0_i32 = arith.constant 0 : i32
    %c0_i32_0 = arith.constant 0 : i32
    %c0_i32_1 = arith.constant 0 : i32
    return %c0_i32, %c0_i32_0 : i32, i32
  }
  func.func @transform_3(%arg0: i32) -> (i32, i32) {
    %c0_i32 = arith.constant 0 : i32
    %c0_i32_0 = arith.constant 0 : i32
    %c0_i32_1 = arith.constant 0 : i32
    return %c0_i32, %c0_i32_0 : i32, i32
  }
  func.func @transform_4(%arg0: i32) -> (i32, i32) {
    %c0_i32 = arith.constant 0 : i32
    %c0_i32_0 = arith.constant 0 : i32
    %c0_i32_1 = arith.constant 0 : i32
    return %c0_i32, %c0_i32_0 : i32, i32
  }
  func.func @transform_5(%arg0: i32) -> (i32, i32) {
    %c0_i32 = arith.constant 0 : i32
    %c0_i32_0 = arith.constant 0 : i32
    %c0_i32_1 = arith.constant 0 : i32
    return %c0_i32, %c0_i32_0 : i32, i32
  }
  func.func @transform_6(%arg0: i32) -> (i32, i32) {
    %c0_i32 = arith.constant 0 : i32
    %c0_i32_0 = arith.constant 0 : i32
    %c0_i32_1 = arith.constant 0 : i32
    return %c0_i32, %c0_i32_0 : i32, i32
  }
  func.func @transform_7(%arg0: i32) -> (i32, i32) {
    %c0_i32 = arith.constant 0 : i32
    %c0_i32_0 = arith.constant 0 : i32
    %c0_i32_1 = arith.constant 0 : i32
    return %c0_i32, %c0_i32_0 : i32, i32
  }
  func.func @transform_8(%arg0: i32) -> (i32, i32) {
    %c0_i32 = arith.constant 0 : i32
    %c0_i32_0 = arith.constant 0 : i32
    %c0_i32_1 = arith.constant 0 : i32
    return %c0_i32, %c0_i32_0 : i32, i32
  }
  func.func @transform_9(%arg0: i32) -> (i32, i32) {
    %c0_i32 = arith.constant 0 : i32
    %c0_i32_0 = arith.constant 0 : i32
    return %arg0, %c0_i32 : i32, i32
  }
}

</mosaic_0001>

<llo_original>
// kernel: policy_forward.1
$region0: #{policy_forward.1}
  #allocation0 [shape = 'u32[]', space=smem, size = 0x4, offset = 0x4, fixed_abs, tag = 'smem constant byte address 0x4 - core index']
  #allocation1 [shape = 'u32[72,128]{1,0:T(1,128)}', space=vmem, size = 0x9000, scoped, tag = 'internal scratch']
  %s0 = inlined_call_operand.hbm [shape: bf16[8,128], index: 0, kind: input, shape index: {}]
  %s1 = inlined_call_operand.hbm [shape: bf16[128,128], index: 1, kind: input, shape index: {}]
  %s2 = inlined_call_operand.vmem [shape: f32[1,128], index: 2, kind: input, shape index: {}]
  %s3 = inlined_call_operand.hbm [shape: bf16[128,128], index: 3, kind: input, shape index: {}]
  %s4 = inlined_call_operand.vmem [shape: f32[1,128], index: 4, kind: input, shape index: {}]
  %s5 = inlined_call_operand.hbm [shape: bf16[128,128], index: 5, kind: input, shape index: {}]
  %s6 = inlined_call_operand.vmem [shape: f32[1,128], index: 6, kind: input, shape index: {}]
  %s7 = inlined_call_operand.hbm [shape: bf16[128,128], index: 7, kind: input, shape index: {}]
  %s8 = inlined_call_operand.vmem [shape: f32[1,128], index: 8, kind: input, shape index: {}]
  %s9 = inlined_call_operand.vmem [shape: f32[8,4], index: 9, kind: output, shape index: {}]
  %s10 = sld [smem:[#allocation0]]
  $region66: #{policy_forward.1} parent=0
    _
  %s12 = ssub.s32 1, %s10
  %s13 = scalar_select 0, %s12, %s10
  $region1: #{policy_forward.1} parent=0
    #allocation2 [shape = 'u8[2048]{0}', space=vmem, size = 0x800, scoped, tag = 'input window, operand 0, single buffered']
    #allocation3 [shape = 's32[1]{0}', space=sflag, size = 0x4, scoped, tag = 'scoped memory for policy_forward.1']
    #allocation4 [shape = 'u8[32768]{0}', space=vmem, size = 0x8000, scoped, tag = 'input window, operand 1, single buffered']
    #allocation5 [shape = 's32[1]{0}', space=sflag, size = 0x4, scoped, tag = 'scoped memory for policy_forward.1']
    #allocation6 [shape = 'u8[32768]{0}', space=vmem, size = 0x8000, scoped, tag = 'input window, operand 3, single buffered']
    #allocation7 [shape = 'u8[32768]{0}', space=vmem, size = 0x8000, scoped, tag = 'input window, operand 5, single buffered']
    #allocation8 [shape = 's32[1]{0}', space=sflag, size = 0x4, scoped, tag = 'scoped memory for policy_forward.1']
    #allocation9 [shape = 'u8[32768]{0}', space=vmem, size = 0x8000, scoped, tag = 'input window, operand 7, single buffered']
    %14 = vsyncpa [#allocation3], 0
    %15 = vsyncpa [#allocation5], 0
    %16 = vsyncpa [#allocation8], 0
    // Predicated region
    $region2: #{policy_forward.1} parent=1 // pred_check
      _
    $region3: #{policy_forward.1} parent=1 // pred_check_branch
      %18 = sbr.rel (0) target = $region5
    $region4: #{policy_forward.1} parent=1 // pred_region
      %20 = vsyncadd [#allocation3], 0
      %s22 = sshll.u32 %s0, 4
      %s23 = int_to_ptr.hbm [resolvable:$true] %s22
      %s24 = sshll.u32 [#allocation2], 4
      %s25 = int_to_ptr.vmem [resolvable:$true] %s24
      %27 = dma.hbm_to_vmem [thread:$0]  %s23, 64, %s25, [#allocation3]
    $region5: #{policy_forward.1} parent=1 // pred_fallthru
      _
    // Predicated region
    $region6: #{policy_forward.1} parent=1 // pred_check
      _
    $region7: #{policy_forward.1} parent=1 // pred_check_branch
      %29 = sbr.rel (0) target = $region9
    $region8: #{policy_forward.1} parent=1 // pred_region
      %31 = vsyncadd [#allocation5], 0
      %s32 = sshll.u32 %s1, 4
      %s33 = int_to_ptr.hbm [resolvable:$true] %s32
      %s34 = sshll.u32 [#allocation4], 4
      %s35 = int_to_ptr.vmem [resolvable:$true] %s34
      %40 = dma.hbm_to_vmem [thread:$0]  %s33, 1024, %s35, [#allocation5], 64, 64, 4
    $region9: #{policy_forward.1} parent=1 // pred_fallthru
      _
    // Predicated region
    $region10: #{policy_forward.1} parent=1 // pred_check
      _
    $region11: #{policy_forward.1} parent=1 // pred_check_branch
      %42 = sbr.rel (0) target = $region13
    $region12: #{policy_forward.1} parent=1 // pred_region
      _
    $region13: #{policy_forward.1} parent=1 // pred_fallthru
      _
    // Predicated region
    $region14: #{policy_forward.1} parent=1 // pred_check
      _
    $region15: #{policy_forward.1} parent=1 // pred_check_branch
      %44 = sbr.rel (0) target = $region17
    $region16: #{policy_forward.1} parent=1 // pred_region
      %46 = vsyncadd [#allocation5], 0
      %s47 = sshll.u32 %s3, 4
      %s48 = int_to_ptr.hbm [resolvable:$true] %s47
      %s49 = sshll.u32 [#allocation6], 4
      %s50 = int_to_ptr.vmem [resolvable:$true] %s49
      %55 = dma.hbm_to_vmem [thread:$0]  %s48, 1024, %s50, [#allocation5], 64, 64, 4
    $region17: #{policy_forward.1} parent=1 // pred_fallthru
      _
    // Predicated region
    $region18: #{policy_forward.1} parent=1 // pred_check
      _
    $region19: #{policy_forward.1} parent=1 // pred_check_branch
      %57 = sbr.rel (0) target = $region21
    $region20: #{policy_forward.1} parent=1 // pred_region
      _
    $region21: #{policy_forward.1} parent=1 // pred_fallthru
      _
    // Predicated region
    $region22: #{policy_forward.1} parent=1 // pred_check
      _
    $region23: #{policy_forward.1} parent=1 // pred_check_branch
      %59 = sbr.rel (0) target = $region25
    $region24: #{policy_forward.1} parent=1 // pred_region
      %61 = vsyncadd [#allocation8], 0
      %s62 = sshll.u32 %s5, 4
      %s63 = int_to_ptr.hbm [resolvable:$true] %s62
      %s64 = sshll.u32 [#allocation7], 4
      %s65 = int_to_ptr.vmem [resolvable:$true] %s64
      %70 = dma.hbm_to_vmem [thread:$0]  %s63, 1024, %s65, [#allocation8], 64, 64, 4
    $region25: #{policy_forward.1} parent=1 // pred_fallthru
      _
    // Predicated region
    $region26: #{policy_forward.1} parent=1 // pred_check
      _
    $region27: #{policy_forward.1} parent=1 // pred_check_branch
      %72 = sbr.rel (0) target = $region29
    $region28: #{policy_forward.1} parent=1 // pred_region
      _
    $region29: #{policy_forward.1} parent=1 // pred_fallthru
      _
    // Predicated region
    $region30: #{policy_forward.1} parent=1 // pred_check
      _
    $region31: #{policy_forward.1} parent=1 // pred_check_branch
      %74 = sbr.rel (0) target = $region33
    $region32: #{policy_forward.1} parent=1 // pred_region
      %76 = vsyncadd [#allocation8], 0
      %s77 = sshll.u32 %s7, 4
      %s78 = int_to_ptr.hbm [resolvable:$true] %s77
      %s79 = sshll.u32 [#allocation9], 4
      %s80 = int_to_ptr.vmem [resolvable:$true] %s79
      %85 = dma.hbm_to_vmem [thread:$0]  %s78, 1024, %s80, [#allocation8], 64, 64, 4
    $region33: #{policy_forward.1} parent=1 // pred_fallthru
      _
    // Predicated region
    $region34: #{policy_forward.1} parent=1 // pred_check
      _
    $region35: #{policy_forward.1} parent=1 // pred_check_branch
      %87 = sbr.rel (0) target = $region37
    $region36: #{policy_forward.1} parent=1 // pred_region
      _
    $region37: #{policy_forward.1} parent=1 // pred_fallthru
      _
    // Predicated region
    $region38: #{policy_forward.1} parent=1 // pred_check
      _
    $region39: #{policy_forward.1} parent=1 // pred_check_branch
      %89 = sbr.rel (0) target = $region41
    $region40: #{policy_forward.1} parent=1 // pred_region
      %91 = dma.done [#allocation3], 64
    $region41: #{policy_forward.1} parent=1 // pred_fallthru
      _
    // Predicated region
    $region42: #{policy_forward.1} parent=1 // pred_check
      _
    $region43: #{policy_forward.1} parent=1 // pred_check_branch
      %93 = sbr.rel (0) target = $region45
    $region44: #{policy_forward.1} parent=1 // pred_region
      %95 = dma.done [#allocation5], 1024
    $region45: #{policy_forward.1} parent=1 // pred_fallthru
      _
    // Predicated region
    $region46: #{policy_forward.1} parent=1 // pred_check
      _
    $region47: #{policy_forward.1} parent=1 // pred_check_branch
      %97 = sbr.rel (0) target = $region49
    $region48: #{policy_forward.1} parent=1 // pred_region
      %99 = dma.done [#allocation5], 1024
    $region49: #{policy_forward.1} parent=1 // pred_fallthru
      _
    // Predicated region
    $region50: #{policy_forward.1} parent=1 // pred_check
      _
    $region51: #{policy_forward.1} parent=1 // pred_check_branch
      %101 = sbr.rel (0) target = $region53
    $region52: #{policy_forward.1} parent=1 // pred_region
      %103 = dma.done [#allocation8], 1024
    $region53: #{policy_forward.1} parent=1 // pred_fallthru
      _
    // Predicated region
    $region54: #{policy_forward.1} parent=1 // pred_check
      _
    $region55: #{policy_forward.1} parent=1 // pred_check_branch
      %105 = sbr.rel (0) target = $region57
    $region56: #{policy_forward.1} parent=1 // pred_region
      %107 = dma.done [#allocation8], 1024
    $region57: #{policy_forward.1} parent=1 // pred_fallthru
      _
    %v108 = vld [vmem:[#allocation2] sm:$0xf]
    %v109 = vld [vmem:[#allocation4] sm:$0xf]
    %v110 = vld [vmem:[#allocation4 + $0x4] sm:$0xf]
    %v111 = vld [vmem:[#allocation4 + $0x8] sm:$0xf]
    %v112 = vld [vmem:[#allocation4 + $0xc] sm:$0xf]
    %v113 = vld [vmem:[#allocation4 + $0x10] sm:$0xf]
    %v114 = vld [vmem:[#allocation4 + $0x14] sm:$0xf]
    %v115 = vld [vmem:[#allocation4 + $0x18] sm:$0xf]
    %v116 = vld [vmem:[#allocation4 + $0x1c] sm:$0xf]
    %v117 = vld [vmem:[#allocation4 + $0x20] sm:$0xf]
    %v118 = vld [vmem:[#allocation4 + $0x24] sm:$0xf]
    %v119 = vld [vmem:[#allocation4 + $0x28] sm:$0xf]
    %v120 = vld [vmem:[#allocation4 + $0x2c] sm:$0xf]
    %v121 = vld [vmem:[#allocation4 + $0x30] sm:$0xf]
    %v122 = vld [vmem:[#allocation4 + $0x34] sm:$0xf]
    %v123 = vld [vmem:[#allocation4 + $0x38] sm:$0xf]
    %v124 = vld [vmem:[#allocation4 + $0x3c] sm:$0xf]
    %v125 = vld [vmem:[%s2] sm:$0x1]
    %v127 = vperm.slane %v125, 0
    %v145 = vunpack.c.l.b16 %v109
    %v146 = vunpack.c.l.b16 %v110
    %v147 = vunpack.c.l.b16 %v111
    %v148 = vunpack.c.l.b16 %v112
    %v149 = vunpack.c.l.b16 %v113
    %v150 = vunpack.c.l.b16 %v114
    %v151 = vunpack.c.l.b16 %v115
    %v152 = vunpack.c.l.b16 %v116
    %v153 = vunpack.c.l.b16 %v117
    %v154 = vunpack.c.l.b16 %v118
    %v155 = vunpack.c.l.b16 %v119
    %v156 = vunpack.c.l.b16 %v120
    %v157 = vunpack.c.l.b16 %v121
    %v158 = vunpack.c.l.b16 %v122
    %v159 = vunpack.c.l.b16 %v123
    %v160 = vunpack.c.l.b16 %v124
    %v161 = vpack.c.b16 %v146, %v145
    %v162 = vpack.c.b16 %v148, %v147
    %v163 = vpack.c.b16 %v150, %v149
    %v164 = vpack.c.b16 %v152, %v151
    %v165 = vpack.c.b16 %v154, %v153
    %v166 = vpack.c.b16 %v156, %v155
    %v167 = vpack.c.b16 %v158, %v157
    %v168 = vpack.c.b16 %v160, %v159
    %177 = vmatpush.bf16.msra.mxu0 %v168
    %178 = vmatpush.bf16.msra.mxu0 %v167
    %179 = vmatpush.bf16.msra.mxu0 %v166
    %180 = vmatpush.bf16.msra.mxu0 %v165
    %181 = vmatpush.bf16.msra.mxu0 %v164
    %182 = vmatpush.bf16.msra.mxu0 %v163
    %183 = vmatpush.bf16.msra.mxu0 %v162
    %184 = vmatpush.bf16.msra.mxu0 %v161
    %185 = vmatmul.bf16.gmra.mxu0 %v108
    %v186 = vpop.f32.mrf.mxu0
    %v187 = vadd.f32 %v127, %v186
    %v188 = vpop.f32.mrf.mxu0
    %189 = vdwg.mxu0
    %v190 = vmul.f32 %v187, 0.1
    %v191 = vmax.f32 %v187, %v190
    %v192 = vpack.c.bf16 %v191, %v191
    %v193 = vld [vmem:[#allocation6] sm:$0xf]
    %v194 = vld [vmem:[#allocation6 + $0x4] sm:$0xf]
    %v195 = vld [vmem:[#allocation6 + $0x8] sm:$0xf]
    %v196 = vld [vmem:[#allocation6 + $0xc] sm:$0xf]
    %v197 = vld [vmem:[#allocation6 + $0x10] sm:$0xf]
    %v198 = vld [vmem:[#allocation6 + $0x14] sm:$0xf]
    %v199 = vld [vmem:[#allocation6 + $0x18] sm:$0xf]
    %v200 = vld [vmem:[#allocation6 + $0x1c] sm:$0xf]
    %v201 = vld [vmem:[#allocation6 + $0x20] sm:$0xf]
    %v202 = vld [vmem:[#allocation6 + $0x24] sm:$0xf]
    %v203 = vld [vmem:[#allocation6 + $0x28] sm:$0xf]
    %v204 = vld [vmem:[#allocation6 + $0x2c] sm:$0xf]
    %v205 = vld [vmem:[#allocation6 + $0x30] sm:$0xf]
    %v206 = vld [vmem:[#allocation6 + $0x34] sm:$0xf]
    %v207 = vld [vmem:[#allocation6 + $0x38] sm:$0xf]
    %v208 = vld [vmem:[#allocation6 + $0x3c] sm:$0xf]
    %v209 = vld [vmem:[%s4] sm:$0x1]
    %v211 = vperm.slane %v209, 0
    %v229 = vunpack.c.l.b16 %v193
    %v230 = vunpack.c.l.b16 %v194
    %v231 = vunpack.c.l.b16 %v195
    %v232 = vunpack.c.l.b16 %v196
    %v233 = vunpack.c.l.b16 %v197
    %v234 = vunpack.c.l.b16 %v198
    %v235 = vunpack.c.l.b16 %v199
    %v236 = vunpack.c.l.b16 %v200
    %v237 = vunpack.c.l.b16 %v201
    %v238 = vunpack.c.l.b16 %v202
    %v239 = vunpack.c.l.b16 %v203
    %v240 = vunpack.c.l.b16 %v204
    %v241 = vunpack.c.l.b16 %v205
    %v242 = vunpack.c.l.b16 %v206
    %v243 = vunpack.c.l.b16 %v207
    %v244 = vunpack.c.l.b16 %v208
    %v245 = vpack.c.b16 %v230, %v229
    %v246 = vpack.c.b16 %v232, %v231
    %v247 = vpack.c.b16 %v234, %v233
    %v248 = vpack.c.b16 %v236, %v235
    %v249 = vpack.c.b16 %v238, %v237
    %v250 = vpack.c.b16 %v240, %v239
    %v251 = vpack.c.b16 %v242, %v241
    %v252 = vpack.c.b16 %v244, %v243
    %261 = vmatpush.bf16.msra.mxu0 %v252
    %262 = vmatpush.bf16.msra.mxu0 %v251
    %263 = vmatpush.bf16.msra.mxu0 %v250
    %264 = vmatpush.bf16.msra.mxu0 %v249
    %265 = vmatpush.bf16.msra.mxu0 %v248
    %266 = vmatpush.bf16.msra.mxu0 %v247
    %267 = vmatpush.bf16.msra.mxu0 %v246
    %268 = vmatpush.bf16.msra.mxu0 %v245
    %269 = vmatmul.bf16.gmra.mxu0 %v192
    %v270 = vpop.f32.mrf.mxu0
    %v271 = vadd.f32 %v211, %v270
    %v272 = vpop.f32.mrf.mxu0
    %273 = vdwg.mxu0
    %v274 = vmul.f32 %v271, 0.1
    %v275 = vmax.f32 %v271, %v274
    %v276 = vpack.c.bf16 %v275, %v275
    %v277 = vld [vmem:[#allocation7] sm:$0xf]
    %v278 = vld [vmem:[#allocation7 + $0x4] sm:$0xf]
    %v279 = vld [vmem:[#allocation7 + $0x8] sm:$0xf]
    %v280 = vld [vmem:[#allocation7 + $0xc] sm:$0xf]
    %v281 = vld [vmem:[#allocation7 + $0x10] sm:$0xf]
    %v282 = vld [vmem:[#allocation7 + $0x14] sm:$0xf]
    %v283 = vld [vmem:[#allocation7 + $0x18] sm:$0xf]
    %v284 = vld [vmem:[#allocation7 + $0x1c] sm:$0xf]
    %v285 = vld [vmem:[#allocation7 + $0x20] sm:$0xf]
    %v286 = vld [vmem:[#allocation7 + $0x24] sm:$0xf]
    %v287 = vld [vmem:[#allocation7 + $0x28] sm:$0xf]
    %v288 = vld [vmem:[#allocation7 + $0x2c] sm:$0xf]
    %v289 = vld [vmem:[#allocation7 + $0x30] sm:$0xf]
    %v290 = vld [vmem:[#allocation7 + $0x34] sm:$0xf]
    %v291 = vld [vmem:[#allocation7 + $0x38] sm:$0xf]
    %v292 = vld [vmem:[#allocation7 + $0x3c] sm:$0xf]
    %v293 = vld [vmem:[%s6] sm:$0x1]
    %v295 = vperm.slane %v293, 0
    %v313 = vunpack.c.l.b16 %v277
    %v314 = vunpack.c.l.b16 %v278
    %v315 = vunpack.c.l.b16 %v279
    %v316 = vunpack.c.l.b16 %v280
    %v317 = vunpack.c.l.b16 %v281
    %v318 = vunpack.c.l.b16 %v282
    %v319 = vunpack.c.l.b16 %v283
    %v320 = vunpack.c.l.b16 %v284
    %v321 = vunpack.c.l.b16 %v285
    %v322 = vunpack.c.l.b16 %v286
    %v323 = vunpack.c.l.b16 %v287
    %v324 = vunpack.c.l.b16 %v288
    %v325 = vunpack.c.l.b16 %v289
    %v326 = vunpack.c.l.b16 %v290
    %v327 = vunpack.c.l.b16 %v291
    %v328 = vunpack.c.l.b16 %v292
    %v329 = vpack.c.b16 %v314, %v313
    %v330 = vpack.c.b16 %v316, %v315
    %v331 = vpack.c.b16 %v318, %v317
    %v332 = vpack.c.b16 %v320, %v319
    %v333 = vpack.c.b16 %v322, %v321
    %v334 = vpack.c.b16 %v324, %v323
    %v335 = vpack.c.b16 %v326, %v325
    %v336 = vpack.c.b16 %v328, %v327
    %345 = vmatpush.bf16.msra.mxu0 %v336
    %346 = vmatpush.bf16.msra.mxu0 %v335
    %347 = vmatpush.bf16.msra.mxu0 %v334
    %348 = vmatpush.bf16.msra.mxu0 %v333
    %349 = vmatpush.bf16.msra.mxu0 %v332
    %350 = vmatpush.bf16.msra.mxu0 %v331
    %351 = vmatpush.bf16.msra.mxu0 %v330
    %352 = vmatpush.bf16.msra.mxu0 %v329
    %353 = vmatmul.bf16.gmra.mxu0 %v276
    %v354 = vpop.f32.mrf.mxu0
    %v355 = vadd.f32 %v295, %v354
    %v356 = vpop.f32.mrf.mxu0
    %357 = vdwg.mxu0
    %v358 = vmul.f32 %v355, 0.1
    %v359 = vmax.f32 %v355, %v358
    %v360 = vpack.c.bf16 %v359, %v359
    %v361 = vld [vmem:[#allocation9] sm:$0xf]
    %v362 = vld [vmem:[#allocation9 + $0x4] sm:$0xf]
    %v363 = vld [vmem:[#allocation9 + $0x8] sm:$0xf]
    %v364 = vld [vmem:[#allocation9 + $0xc] sm:$0xf]
    %v365 = vld [vmem:[#allocation9 + $0x10] sm:$0xf]
    %v366 = vld [vmem:[#allocation9 + $0x14] sm:$0xf]
    %v367 = vld [vmem:[#allocation9 + $0x18] sm:$0xf]
    %v368 = vld [vmem:[#allocation9 + $0x1c] sm:$0xf]
    %v369 = vld [vmem:[#allocation9 + $0x20] sm:$0xf]
    %v370 = vld [vmem:[#allocation9 + $0x24] sm:$0xf]
    %v371 = vld [vmem:[#allocation9 + $0x28] sm:$0xf]
    %v372 = vld [vmem:[#allocation9 + $0x2c] sm:$0xf]
    %v373 = vld [vmem:[#allocation9 + $0x30] sm:$0xf]
    %v374 = vld [vmem:[#allocation9 + $0x34] sm:$0xf]
    %v375 = vld [vmem:[#allocation9 + $0x38] sm:$0xf]
    %v376 = vld [vmem:[#allocation9 + $0x3c] sm:$0xf]
    %v377 = vld [vmem:[%s8] sm:$0x1]
    %v379 = vperm.slane %v377, 0
    %v397 = vunpack.c.l.b16 %v361
    %v398 = vunpack.c.l.b16 %v362
    %v399 = vunpack.c.l.b16 %v363
    %v400 = vunpack.c.l.b16 %v364
    %v401 = vunpack.c.l.b16 %v365
    %v402 = vunpack.c.l.b16 %v366
    %v403 = vunpack.c.l.b16 %v367
    %v404 = vunpack.c.l.b16 %v368
    %v405 = vunpack.c.l.b16 %v369
    %v406 = vunpack.c.l.b16 %v370
    %v407 = vunpack.c.l.b16 %v371
    %v408 = vunpack.c.l.b16 %v372
    %v409 = vunpack.c.l.b16 %v373
    %v410 = vunpack.c.l.b16 %v374
    %v411 = vunpack.c.l.b16 %v375
    %v412 = vunpack.c.l.b16 %v376
    %v413 = vpack.c.b16 %v398, %v397
    %v414 = vpack.c.b16 %v400, %v399
    %v415 = vpack.c.b16 %v402, %v401
    %v416 = vpack.c.b16 %v404, %v403
    %v417 = vpack.c.b16 %v406, %v405
    %v418 = vpack.c.b16 %v408, %v407
    %v419 = vpack.c.b16 %v410, %v409
    %v420 = vpack.c.b16 %v412, %v411
    %429 = vmatpush.bf16.msra.mxu0 %v420
    %430 = vmatpush.bf16.msra.mxu0 %v419
    %431 = vmatpush.bf16.msra.mxu0 %v418
    %432 = vmatpush.bf16.msra.mxu0 %v417
    %433 = vmatpush.bf16.msra.mxu0 %v416
    %434 = vmatpush.bf16.msra.mxu0 %v415
    %435 = vmatpush.bf16.msra.mxu0 %v414
    %436 = vmatpush.bf16.msra.mxu0 %v413
    %437 = vmatmul.bf16.gmra.mxu0 %v360
    %v438 = vpop.f32.mrf.mxu0
    %v439 = vadd.f32 %v379, %v438
    %v440 = vpop.f32.mrf.mxu0
    %441 = vdwg.mxu0
    %vm442 = vcmask 31744
    %v443 = vsel %vm442, %v439, -inf
    %444 = vmax.xlane.f32.xlu0 %v443
    %v445 = vpop.xlane.xlu0 %444
    %v446 = vsub.f32 %v439, %v445
    %v447 = vmul.f32 %v446, 1.442695
    %v448 = vpow.pop %v447
    %v449 = vsel %vm442, %v448, 0.0
    %450 = vadd.xlane.f32.xlu0 %v449
    %v451 = vpop.xlane.xlu0 %450
    %v452 = vrcp.pop %v451
    %v453 = vmul.f32 %v451, %v452
    %v454 = vsub.f32 1.0, %v453
    %v455 = vmul.f32 %v452, %v454
    %v456 = vadd.f32 %v452, %v455
    %vm457 = vweird.f32 %v451
    %vm458 = vweird.f32 %v452
    %vm459 = vmor %vm457, %vm458
    %v460 = vsel %vm459, %v452, %v456
    %v461 = vand.u32 2147483647, %v451
    %vm462 = vcmp.eq.f32.partialorder %v461, 8.507059e+37
    %v463 = vand.u32 %v451, 2147483648
    %v464 = vor.u32 1.1754944e-38, %v463
    %v465 = vsel %vm462, %v464, %v460
    %v466 = vmul.f32 %v448, %v465
    %467 = vst.msk [vmem:[%s9] sm:$0xff] %vm442, %v466
    // Predicated region
    $region58: #{policy_forward.1} parent=1 // pred_check
      _
    $region59: #{policy_forward.1} parent=1 // pred_check_branch
      %469 = sbr.rel (0) target = $region61
    $region60: #{policy_forward.1} parent=1 // pred_region
      _
    $region61: #{policy_forward.1} parent=1 // pred_fallthru
      _
    // Predicated region
    $region62: #{policy_forward.1} parent=1 // pred_check
      _
    $region63: #{policy_forward.1} parent=1 // pred_check_branch
      %471 = sbr.rel (0) target = $region65
    $region64: #{policy_forward.1} parent=1 // pred_region
      _
    $region65: #{policy_forward.1} parent=1 // pred_fallthru
      _
    %472 = vsyncpa [#allocation3], 1
    %473 = vsyncpa [#allocation5], 1
    %474 = vsyncpa [#allocation8], 1

</llo_original>
